<compile_context>
chip_gen: v7x
topology: tpu7x:2x2x1
jax: 0.10.0
libtpu: 0.0.40
codegen_flags: <defaults>
</compile_context>

<pallas_src>
import jax
import jax.numpy as jnp
from jax.experimental import pallas as pl
from jax.experimental.pallas import tpu as pltpu


def _rpp_kernel(x_ref, w_ref, b_ref, o_ref):
    # x_ref: [TB, H] native dtype (CLS rows), w_ref: [H, C_pad] bf16,
    # b_ref: [1, C_pad] f32, o_ref: [TB, C_pad] f32.
    x = x_ref[...].astype(jnp.bfloat16)          # tile-local cast, no HBM pass
    logits = jnp.dot(x, w_ref[...],
                     preferred_element_type=jnp.float32) + b_ref[...]
    # Numerically stable log-softmax in f32 (padded lanes hold -1e30 -> exp()==0).
    m = jnp.max(logits, axis=-1, keepdims=True)
    shifted = logits - m
    lse = jnp.log(jnp.sum(jnp.exp(shifted), axis=-1, keepdims=True))
    o_ref[...] = (shifted - lse).astype(o_ref.dtype)


def _round_up(v, m):
    return ((v + m - 1) // m) * m


def relation_pair_prediction(x, weight, bias, *, tb_cap=512):
    """x: [B, S, H], weight: [C, H], bias: [C] -> [B, C] log-probs (f32)."""
    B, S, H = x.shape
    C = weight.shape[0]

    # --- parameters: one-time layout fixups (hoist to init in a real model).
    w_t = weight.T                                  # [H, C] — MXU-native layout
    if w_t.dtype != jnp.bfloat16:
        w_t = w_t.astype(jnp.bfloat16)

    # Lane padding only when it buys dense stores AND C isn't already aligned.
    c_pad = C if (C <= 128 or C % 128 == 0) else _round_up(C, 128)
    if c_pad != C:
        w_t = jnp.pad(w_t, ((0, 0), (0, c_pad - C)))
        b_row = jnp.full((1, c_pad), -1e30, dtype=jnp.float32)
        b_row = b_row.at[0, :C].set(bias.astype(jnp.float32))
    else:
        b_row = bias.astype(jnp.float32).reshape(1, C)

    # --- batch tiling: whole batch if tiny; otherwise >=4 grid steps (so v7x's
    # two TensorCores each get >=2 tiles), tb a multiple of 16, capped at tb_cap.
    if B <= 32:
        tb = B
    else:
        tb = min(tb_cap, max(16, _round_up((B + 3) // 4, 16)))
    grid = ((B + tb - 1) // tb,)

    # --- CLS-row input path: fold the [:,0] slice into the DMA when each strided
    # row moves >=512 B; for small H, pre-slice so the DMA stays contiguous.
    x_item = x.dtype.itemsize
    if H * x_item >= 512:
        x_arg = x
        x_spec = pl.BlockSpec((tb, None, H), lambda i: (i, 0, 0))
    else:
        x_arg = x[:, 0]                             # [B, H], contiguous rows
        x_spec = pl.BlockSpec((tb, H), lambda i: (i, 0))

    # --- VMEM budget (double-buffered x/out tiles + resident weight/bias).
    vmem_bytes = (2 * tb * H * x_item               # x tiles (double-buffered)
                  + 2 * c_pad * H * 2               # weight bf16 (2 bufs, conservative)
                  + 2 * c_pad * 4                   # bias
                  + 2 * tb * c_pad * 4)             # out tiles (f32)
    try:
        vmem_cap = int(pltpu.get_tpu_info().vmem_capacity_bytes)
    except Exception:
        vmem_cap = 64 * 1024 * 1024
    vmem_limit = int(min(max(2 * vmem_bytes, 4 * 1024 * 1024), vmem_cap * 3 // 4))

    cost = pl.CostEstimate(
        flops=2 * B * H * c_pad,
        transcendentals=B * (c_pad + 1),            # exp lanes + log
        bytes_accessed=(B * H * x_item + c_pad * H * 2
                        + c_pad * 4 + B * c_pad * 4),
    )

    out = pl.pallas_call(
        _rpp_kernel,
        out_shape=jax.ShapeDtypeStruct((B, c_pad), jnp.float32),
        grid=grid,
        in_specs=[
            x_spec,
            # Weight / bias: constant index_map -> fetched once, VMEM-resident.
            pl.BlockSpec((H, c_pad), lambda i: (0, 0)),
            pl.BlockSpec((1, c_pad), lambda i: (0, 0)),
        ],
        out_specs=pl.BlockSpec((tb, c_pad), lambda i: (i, 0)),
        compiler_params=pltpu.CompilerParams(
            dimension_semantics=("parallel",),
            vmem_limit_bytes=vmem_limit,
        ),
        cost_estimate=cost,
    )(x_arg, w_t, b_row)

    return out if c_pad == C else out[:, :C]


if __name__ == "__main__":
    B, S, H, C = 2, 8, 32, 4   # batch, seq, hidden, num_class

    key = jax.random.PRNGKey(0)
    kx, kw, kb = jax.random.split(key, 3)

    # Deterministic parameter init (mirrors nn.Linear + xavier_normal_(gain=1.414)).
    gain = 1.414
    std = gain * (2.0 / (H + C)) ** 0.5
    weight = std * jax.random.normal(kw, (C, H), dtype=jnp.float32)   # [num_class, hidden]
    bound = 1.0 / (H ** 0.5)
    bias = jax.random.uniform(kb, (C,), dtype=jnp.float32,
                              minval=-bound, maxval=bound)

    x = jax.random.normal(kx, (B, S, H), dtype=jnp.float32)

    out = relation_pair_prediction(x, weight, bias)
    jax.block_until_ready(out)

    # Pure-JAX reference with the same in-kernel bf16 operand rounding.
    x_cls = x[:, 0].astype(jnp.bfloat16).astype(jnp.float32)
    w_r = weight.astype(jnp.bfloat16).astype(jnp.float32)
    logits = jnp.dot(x_cls, w_r.T, precision=jax.lax.Precision.HIGHEST) + bias
    ref = jax.nn.log_softmax(logits, axis=-1)

    assert out.shape == (B, C)
    assert out.dtype == jnp.float32
    assert jnp.allclose(out, ref, atol=1e-3, rtol=1e-3)

    print("KERNEL_OK")
</pallas_src>

<mosaic_0001>
module attributes {stable_mosaic.version = 11 : i64} {
  func.func @_rpp_kernel(%arg0: i32, %arg1: memref<2x32xf32, #tpu.memory_space<vmem>>, %arg2: memref<32x4xbf16, #tpu.memory_space<vmem>>, %arg3: memref<1x4xf32, #tpu.memory_space<vmem>>, %arg4: memref<2x4xf32, #tpu.memory_space<vmem>>) attributes {dimension_semantics = [#tpu.dimension_semantics<parallel>], iteration_bounds = array<i64: 1>, scalar_prefetch = 0 : i64, scratch_operands = 0 : i64, tpu.core_type = #tpu.core_type<tc>, window_params = [{transform_indices = @transform_0, window_bounds = array<i64: 2, 32>}, {pipeline_mode = #tpu.pipeline_mode<synchronous>, transform_indices = @transform_1, window_bounds = array<i64: 32, 4>}, {pipeline_mode = #tpu.pipeline_mode<synchronous>, transform_indices = @transform_2, window_bounds = array<i64: 1, 4>}, {transform_indices = @transform_3, window_bounds = array<i64: 2, 4>}]} {
    %c0 = arith.constant 0 : index
    %c0_0 = arith.constant 0 : index
    %0 = vector.load %arg1[%c0, %c0_0] : memref<2x32xf32, #tpu.memory_space<vmem>>, vector<2x32xf32>
    %1 = arith.truncf %0 : vector<2x32xf32> to vector<2x32xbf16>
    %c0_1 = arith.constant 0 : index
    %c0_2 = arith.constant 0 : index
    %2 = vector.load %arg2[%c0_1, %c0_2] : memref<32x4xbf16, #tpu.memory_space<vmem>>, vector<32x4xbf16>
    %cst = arith.constant dense<0.000000e+00> : vector<2x4xf32>
    %3 = tpu.matmul %1, %2, %cst {dimension_numbers = #tpu.dot_dimension_numbers<[1], [0], [0], [1], [0, 0, 1, 1], [], []>} : vector<2x32xbf16>, vector<32x4xbf16>, vector<2x4xf32> -> vector<2x4xf32>
    %c0_3 = arith.constant 0 : index
    %c0_4 = arith.constant 0 : index
    %4 = vector.load %arg3[%c0_3, %c0_4] : memref<1x4xf32, #tpu.memory_space<vmem>>, vector<1x4xf32>
    %5 = vector.broadcast %4 : vector<1x4xf32> to vector<2x4xf32>
    %6 = arith.addf %3, %5 : vector<2x4xf32>
    %cst_5 = arith.constant dense<0xFF800000> : vector<2xf32>
    %7 = vector.multi_reduction <maximumf>, %6, %cst_5 [1] : vector<2x4xf32> to vector<2xf32>
    %8 = vector.shape_cast %7 : vector<2xf32> to vector<2x1xf32>
    %9 = vector.broadcast %8 : vector<2x1xf32> to vector<2x4xf32>
    %10 = arith.subf %6, %9 : vector<2x4xf32>
    %11 = math.exp %10 : vector<2x4xf32>
    %cst_6 = arith.constant dense<0.000000e+00> : vector<2xf32>
    %12 = vector.multi_reduction <add>, %11, %cst_6 [1] : vector<2x4xf32> to vector<2xf32>
    %13 = vector.shape_cast %12 : vector<2xf32> to vector<2x1xf32>
    %14 = math.log %13 : vector<2x1xf32>
    %15 = vector.broadcast %14 : vector<2x1xf32> to vector<2x4xf32>
    %16 = arith.subf %10, %15 : vector<2x4xf32>
    %c0_7 = arith.constant 0 : index
    %c0_8 = arith.constant 0 : index
    %17 = vector.load %arg4[%c0_7, %c0_8] : memref<2x4xf32, #tpu.memory_space<vmem>>, vector<2x4xf32>
    tpu.vector_store %arg4[%c0_7, %c0_8], %16 {strides = array<i32>} : memref<2x4xf32, #tpu.memory_space<vmem>>, vector<2x4xf32>,
    return
  }
  func.func @transform_0(%arg0: i32) -> (i32, i32) {
    %c0_i32 = arith.constant 0 : i32
    %c0_i32_0 = arith.constant 0 : i32
    return %arg0, %c0_i32 : i32, i32
  }
  func.func @transform_1(%arg0: i32) -> (i32, i32) {
    %c0_i32 = arith.constant 0 : i32
    %c0_i32_0 = arith.constant 0 : i32
    %c0_i32_1 = arith.constant 0 : i32
    return %c0_i32, %c0_i32_0 : i32, i32
  }
  func.func @transform_2(%arg0: i32) -> (i32, i32) {
    %c0_i32 = arith.constant 0 : i32
    %c0_i32_0 = arith.constant 0 : i32
    %c0_i32_1 = arith.constant 0 : i32
    return %c0_i32, %c0_i32_0 : i32, i32
  }
  func.func @transform_3(%arg0: i32) -> (i32, i32) {
    %c0_i32 = arith.constant 0 : i32
    %c0_i32_0 = arith.constant 0 : i32
    return %arg0, %c0_i32 : i32, i32
  }
}

</mosaic_0001>

<llo_original>
// kernel: tpu_custom_call.1
$region0: #{tpu_custom_call.1}
  #allocation0 [shape = 'u32[]', space=smem, size = 0x4, offset = 0x4, fixed_abs, tag = 'smem constant byte address 0x4 - core index']
  #allocation1 [shape = 'u32[144,128]{1,0:T(1,128)}', space=vmem, size = 0x12000, scoped, tag = 'internal scratch']
  %s0 = inlined_call_operand.vmem [shape: f32[2,32], index: 0, kind: input, shape index: {}]
  %s1 = inlined_call_operand.vmem [shape: bf16[32,4], index: 1, kind: input, shape index: {}]
  %s2 = inlined_call_operand.vmem [shape: f32[1,4], index: 2, kind: input, shape index: {}]
  %s3 = inlined_call_operand.hbm [shape: f32[2,4], index: 3, kind: output, shape index: {}]
  %s4 = sld [smem:[#allocation0]]
  $region22: #{tpu_custom_call.1} parent=0
    _
  %s6 = ssub.s32 1, %s4
  %s7 = scalar_select 0, %s6, %s4
  $region1: #{tpu_custom_call.1} parent=0
    #allocation2 [shape = 'u8[1024]{0}', space=vmem, size = 0x400, scoped, tag = 'output window, operand 0, single buffered']
    #allocation3 [shape = 's32[1]{0}', space=sflag, size = 0x4, scoped, tag = 'scoped memory for tpu_custom_call.1']
    %8 = vsyncpa [#allocation3], 0
    // Predicated region
    $region2: #{tpu_custom_call.1} parent=1 // pred_check
      _
    $region3: #{tpu_custom_call.1} parent=1 // pred_check_branch
      %10 = sbr.rel (0) target = $region5
    $region4: #{tpu_custom_call.1} parent=1 // pred_region
      _
    $region5: #{tpu_custom_call.1} parent=1 // pred_fallthru
      _
    // Predicated region
    $region6: #{tpu_custom_call.1} parent=1 // pred_check
      _
    $region7: #{tpu_custom_call.1} parent=1 // pred_check_branch
      %12 = sbr.rel (0) target = $region9
    $region8: #{tpu_custom_call.1} parent=1 // pred_region
      _
    $region9: #{tpu_custom_call.1} parent=1 // pred_fallthru
      _
    // Predicated region
    $region10: #{tpu_custom_call.1} parent=1 // pred_check
      _
    $region11: #{tpu_custom_call.1} parent=1 // pred_check_branch
      %14 = sbr.rel (0) target = $region13
    $region12: #{tpu_custom_call.1} parent=1 // pred_region
      _
    $region13: #{tpu_custom_call.1} parent=1 // pred_fallthru
      _
    %v16 = vld [vmem:[%s0] sm:$0x3]
    %v17 = vpack.c.bf16 %v16, %v16
    %v18 = vld [vmem:[%s1] sm:$0xf]
    %v19 = vld [vmem:[%s1 + $0x4] sm:$0xf]
    %v20 = vld [vmem:[%s1 + $0x8] sm:$0xf]
    %v21 = vld [vmem:[%s1 + $0xc] sm:$0xf]
    %v22 = vld [vmem:[%s2] sm:$0x1]
    %v24 = vlaneseq
    %v25 = vshrl.u32 %v24, 7
    %v26 = vsub.s32 0, %v25
    %v27 = vrot.slane %v22, %v26
    %v33 = vunpack.c.l.b16 %v18
    %v34 = vunpack.c.l.b16 %v19
    %v35 = vunpack.c.l.b16 %v20
    %v36 = vunpack.c.l.b16 %v21
    %v37 = vpack.c.b16 %v34, %v33
    %v38 = vpack.c.b16 %v36, %v35
    %vm41 = vcmask 261120
    %v43 = vsel %vm41, %v17, 0
    %45 = vmatprep.subr.bf16.mxu0 0
    %46 = vmatpush1.bf16.msra.mxu0 %v37
    %47 = vmatprep.subr.bf16.mxu0 0
    %48 = vmatpush1.bf16.msra.mxu0 %v38
    %49 = vmatprep.subr.bf16.mxu0 0
    %50 = vmatpush1.bf16.msra.mxu0 0
    %51 = vmatprep.subr.bf16.mxu0 0
    %52 = vmatpush1.bf16.msra.mxu0 0
    %53 = vmatprep.subr.bf16.mxu0 0
    %54 = vmatpush1.bf16.msra.mxu0 0
    %55 = vmatprep.subr.bf16.mxu0 0
    %56 = vmatpush1.bf16.msra.mxu0 0
    %57 = vmatprep.subr.bf16.mxu0 0
    %58 = vmatpush1.bf16.msra.mxu0 0
    %59 = vmatprep.subr.bf16.mxu0 0
    %60 = vmatpush1.bf16.msra.mxu0 0
    %61 = vmatprep.subr.bf16.mxu0 0
    %62 = vmatpush1.bf16.msra.mxu0 0
    %63 = vmatprep.subr.bf16.mxu0 0
    %64 = vmatpush1.bf16.msra.mxu0 0
    %65 = vmatprep.subr.bf16.mxu0 0
    %66 = vmatpush1.bf16.msra.mxu0 0
    %67 = vmatprep.subr.bf16.mxu0 0
    %68 = vmatpush1.bf16.msra.mxu0 0
    %69 = vmatprep.subr.bf16.mxu0 0
    %70 = vmatpush1.bf16.msra.mxu0 0
    %71 = vmatprep.subr.bf16.mxu0 0
    %72 = vmatpush1.bf16.msra.mxu0 0
    %73 = vmatprep.subr.bf16.mxu0 0
    %74 = vmatpush1.bf16.msra.mxu0 0
    %75 = vmatprep.subr.bf16.mxu0 0
    %76 = vmatpush1.bf16.msra.mxu0 0
    %77 = vmatprep.mubr.bf16.mxu0 0
    %78 = vmatmul.mubr.bf16.gmra.mrb[0].mxu0 %v43
    %v79 = vpop.f32.mrb[0].mxu0
    %v80 = vadd.f32 %v27, %v79
    %v81 = vpop.f32.mrb[0].mxu0
    %v82 = vpop.f32.mrb[0].mxu0
    %v83 = vpop.f32.mrb[0].mxu0
    %84 = vdwg.mxu0
    %vm85 = vcmask 25600
    %v86 = vsel %vm85, %v80, -inf
    %87 = vmax.xlane.f32.xlu0 %v86
    %v88 = vpop.xlane.xlu0 %87
    %v89 = vsub.f32 %v80, %v88
    %v90 = vmul.f32 %v89, 1.442695
    %v91 = vpow.pop %v90
    %v92 = vsel %vm85, %v91, 0.0
    %93 = vadd.xlane.f32.xlu0 %v92
    %v94 = vpop.xlane.xlu0 %93
    %v95 = vlog2.pop %v94
    %v96 = vmul.f32 %v95, 0.6931472
    %v97 = vsub.f32 %v89, %v96
    %98 = vst.msk [vmem:[#allocation2] sm:$0x3] %vm85, %v97
    // Predicated region
    $region14: #{tpu_custom_call.1} parent=1 // pred_check
      _
    $region15: #{tpu_custom_call.1} parent=1 // pred_check_branch
      %100 = sbr.rel (0) target = $region17
    $region16: #{tpu_custom_call.1} parent=1 // pred_region
      %s102 = ssub.s32 32, 32
      %103 = vsyncadd [#allocation3], %s102
      %s105 = sshll.u32 [#allocation2], 4
      %s106 = int_to_ptr.vmem [resolvable:$true] %s105
      %108 = dma.vmem_to_hbm [thread:$0]  %s106, 32, %s3, [#allocation3]
    $region17: #{tpu_custom_call.1} parent=1 // pred_fallthru
      _
    // Predicated region
    $region18: #{tpu_custom_call.1} parent=1 // pred_check
      _
    $region19: #{tpu_custom_call.1} parent=1 // pred_check_branch
      %110 = sbr.rel (0) target = $region21
    $region20: #{tpu_custom_call.1} parent=1 // pred_region
      %111 = dma.done [#allocation3], 32
    $region21: #{tpu_custom_call.1} parent=1 // pred_fallthru
      _
    %112 = vsyncpa [#allocation3], 1

</llo_original>
